<compile_context>
chip_gen: v6e
topology: v6e:2x2x1
jax: 0.10.0
libtpu: 0.0.40
codegen_flags: <defaults>
</compile_context>

<pallas_src>
import functools

import jax
import jax.numpy as jnp
from jax.experimental import pallas as pl
from jax.experimental.pallas import tpu as pltpu

CONDS = 6
TARGETS = 4
IN_FEATURES = TARGETS + CONDS   # 10
K_PAD = 16                      # IN_FEATURES + 1 (ones row for the b1 fold), sublane-padded
HIDDEN = 128
LANE = 128


def _leaky_relu(x, neg_slope=0.2):
    return jnp.where(x > 0, x, x * neg_slope)


def _cdiv(a, b):
    return (a + b - 1) // b


def _round_up(n, m):
    return _cdiv(n, m) * m


def _choose_tile(batch, tile_b_max):
    """Lane-aligned batch tile with <128 cols of padding waste and grid>=2 when possible."""
    b_round = _round_up(max(batch, 1), LANE)
    n_tiles = _cdiv(b_round, max(_round_up(tile_b_max, LANE), LANE))
    if n_tiles == 1 and b_round >= 2 * LANE:
        n_tiles = 2          # keep both v7x TensorCores busy for moderate batches
    tile = _round_up(_cdiv(b_round, n_tiles), LANE)
    return tile, n_tiles * tile, n_tiles


def discriminator_kernel(x_ref, w1a_ref, w2t_ref, b2_ref, w34p_ref, b34_ref, o_ref,
                         *, act_dtype):
    # x_ref: (K_PAD, TILE_B) bf16 -- features (+ ones row for the b1 fold) on sublanes,
    #        batch on lanes (lane-dense input tile).
    x = x_ref[...]

    # Layer 1: Linear(10,128); b1 folded into the matmul via the ones row.
    # Dropout(0.3) == identity (eval mode).
    d1 = jnp.dot(w1a_ref[...], x, preferred_element_type=jnp.float32)
    h = _leaky_relu(d1.astype(act_dtype))                              # (HIDDEN, TILE_B)

    # Layer 2: Linear(128,128) + LeakyReLU(0.2). Dropout(0.3) == identity (eval mode).
    d2 = jnp.dot(w2t_ref[...], h.astype(jnp.bfloat16),
                 preferred_element_type=jnp.float32)
    h = _leaky_relu(d2.astype(act_dtype) + b2_ref[...])                # (HIDDEN, TILE_B)

    # Folded Linear(128,128)@Linear(128,1) as an (8,128)x(128,TILE_B) MXU matmul
    # (row 0 carries (w3@w4).T, rows 1..7 are zero); scalar bias from SMEM; sigmoid on EUP.
    d3 = jnp.dot(w34p_ref[...], h.astype(jnp.bfloat16),
                 preferred_element_type=jnp.float32)                   # (8, TILE_B) f32
    logit = d3[0:1, :] + b34_ref[0, 0]
    o_ref[...] = jax.nn.sigmoid(logit).astype(o_ref.dtype)             # lane-dense (1, TILE_B)


def discriminator_forward(x, params, *, tile_b=4096, act_dtype=None):
    """x: (B, IN_FEATURES) float32 -> (B, 1) float32."""
    w1, b1, w2, b2, w3, b3, w4, b4 = params
    B = x.shape[0]

    if act_dtype is None:
        kind = jax.devices()[0].device_kind.lower()
        # v5e and earlier have no bf16 VALU/EUP -> keep the elementwise epilogue in f32 there.
        f32_epilogue = any(v in kind for v in ("v2", "v3", "v4", "v5"))
        act_dtype = jnp.float32 if f32_epilogue else jnp.bfloat16

    # Fold the two back-to-back tail linears (no activation between them).
    w34 = (w3 @ w4).astype(jnp.float32)             # (HIDDEN, 1)
    b34 = (b3 @ w4 + b4).astype(jnp.float32)        # (1, 1) scalar bias -> SMEM
    # Pad the folded projection to 8 MXU rows so it runs on the MXU (rows 1..7 zero).
    w34p = jnp.zeros((8, HIDDEN), jnp.float32).at[0].set(w34[:, 0]).astype(jnp.bfloat16)

    # Feature-major params, bf16 MXU operands. b1 folded in as an extra column of w1.
    w1a = jnp.concatenate(
        [w1.T, b1.T, jnp.zeros((HIDDEN, K_PAD - IN_FEATURES - 1), w1.dtype)], axis=1,
    ).astype(jnp.bfloat16)                          # (HIDDEN, K_PAD)
    w2t = w2.T.astype(jnp.bfloat16)                 # (HIDDEN, HIDDEN)
    b2c = b2.T.astype(act_dtype)                    # (HIDDEN, 1), epilogue dtype

    # Batch tiling: lane-dense tiles, bounded padding waste, grid >= 2 when possible.
    tile, b_pad, n_tiles = _choose_tile(B, tile_b)

    # x feature-major as bf16 with the ones row appended (rows 11..15 and batch pad are zero).
    xT = jnp.concatenate([x.T, jnp.ones((1, B), x.dtype)], axis=0).astype(jnp.bfloat16)
    xT = jnp.pad(xT, ((0, K_PAD - (IN_FEATURES + 1)), (0, b_pad - B)))   # (K_PAD, b_pad)

    out = pl.pallas_call(
        functools.partial(discriminator_kernel, act_dtype=act_dtype),
        out_shape=jax.ShapeDtypeStruct((1, b_pad), jnp.float32),
        grid=(n_tiles,),
        in_specs=[
            pl.BlockSpec((K_PAD, tile), lambda i: (0, i)),          # x tile (streamed)
            pl.BlockSpec((HIDDEN, K_PAD), lambda i: (0, 0)),        # w1 | b1 (resident)
            pl.BlockSpec((HIDDEN, HIDDEN), lambda i: (0, 0)),       # w2      (resident)
            pl.BlockSpec((HIDDEN, 1), lambda i: (0, 0)),            # b2      (resident)
            pl.BlockSpec((8, HIDDEN), lambda i: (0, 0)),            # w3@w4   (resident)
            pl.BlockSpec((1, 1), lambda i: (0, 0),
                         memory_space=pltpu.MemorySpace.SMEM),      # b34 scalar
        ],
        out_specs=pl.BlockSpec((1, tile), lambda i: (0, i)),        # lane-dense output
        compiler_params=pltpu.CompilerParams(
            dimension_semantics=("parallel",),       # batch axis -> both v7x TensorCores
            vmem_limit_bytes=48 * 1024 * 1024,       # comfortably under v7x's 64 MiB
        ),
    )(xT, w1a, w2t, b2c, w34p, b34)

    return out[0, :B].reshape(B, 1)


def init_params(key):
    """PyTorch-Linear-style init U(-1/sqrt(fan_in), 1/sqrt(fan_in)).

    Weights stored as (in_features, out_features); biases as (1, out_features).
    """
    dims = [(IN_FEATURES, HIDDEN), (HIDDEN, HIDDEN), (HIDDEN, HIDDEN), (HIDDEN, 1)]
    params = []
    for (fan_in, fan_out) in dims:
        key, kw, kb = jax.random.split(key, 3)
        bound = 1.0 / jnp.sqrt(fan_in)
        w = jax.random.uniform(kw, (fan_in, fan_out), jnp.float32, -bound, bound)
        b = jax.random.uniform(kb, (1, fan_out), jnp.float32, -bound, bound)
        params.extend([w, b])
    return tuple(params)


def reference_forward(x, params):
    """Pure-JAX f32 layer-by-layer reference (exact PyTorch eval-mode semantics)."""
    w1, b1, w2, b2, w3, b3, w4, b4 = params
    h = _leaky_relu(x @ w1 + b1)
    h = _leaky_relu(h @ w2 + b2)
    h = h @ w3 + b3
    return jax.nn.sigmoid(h @ w4 + b4)


def reference_forward_matched(x, params, act_dtype):
    """Reference mirroring the kernel's bf16 MXU / epilogue numerics (tight check)."""
    w1, b1, w2, b2, w3, b3, w4, b4 = params
    w34 = w3 @ w4
    b34 = b3 @ w4 + b4
    d1 = jnp.dot(x.astype(jnp.bfloat16), w1.astype(jnp.bfloat16),
                 preferred_element_type=jnp.float32)
    d1 = d1 + b1.astype(jnp.bfloat16).astype(jnp.float32)   # b1 rounds to bf16 in the fold
    h = _leaky_relu(d1.astype(act_dtype))
    d2 = jnp.dot(h.astype(jnp.bfloat16), w2.astype(jnp.bfloat16),
                 preferred_element_type=jnp.float32)
    h = _leaky_relu(d2.astype(act_dtype) + b2.astype(act_dtype))
    logit = jnp.dot(h.astype(jnp.bfloat16), w34.astype(jnp.bfloat16),
                    preferred_element_type=jnp.float32) + b34
    return jax.nn.sigmoid(logit)


if __name__ == "__main__":
    key = jax.random.PRNGKey(0)
    key, kx = jax.random.split(key)

    batch = 8
    x = jax.random.normal(kx, (batch, IN_FEATURES), dtype=jnp.float32)
    params = init_params(key)

    out = jax.block_until_ready(discriminator_forward(x, params))
    assert out.shape == (batch, 1), out.shape

    kind = jax.devices()[0].device_kind.lower()
    act_dtype = jnp.float32 if any(v in kind for v in ("v2", "v3", "v4", "v5")) else jnp.bfloat16

    ref_matched = reference_forward_matched(x, params, act_dtype)  # same numerics as kernel
    ref_f32 = reference_forward(x, params)                         # exact f32 module semantics
    assert jnp.allclose(out, ref_matched, atol=5e-3, rtol=5e-3), (out, ref_matched)
    assert jnp.allclose(out, ref_f32, atol=2e-2, rtol=0.0), (out, ref_f32)

    print("KERNEL_OK")
</pallas_src>

<mosaic_0001>
module attributes {stable_mosaic.version = 11 : i64} {
  func.func @discriminator_kernel(%arg0: i32, %arg1: memref<16x128xbf16, #tpu.memory_space<vmem>>, %arg2: memref<128x16xbf16, #tpu.memory_space<vmem>>, %arg3: memref<128x128xbf16, #tpu.memory_space<vmem>>, %arg4: memref<128x1xbf16, #tpu.memory_space<vmem>>, %arg5: memref<8x128xbf16, #tpu.memory_space<vmem>>, %arg6: memref<1x1xf32, #tpu.memory_space<smem>>, %arg7: memref<1x128xf32, #tpu.memory_space<vmem>>) attributes {dimension_semantics = [#tpu.dimension_semantics<parallel>], iteration_bounds = array<i64: 1>, scalar_prefetch = 0 : i64, scratch_operands = 0 : i64, tpu.core_type = #tpu.core_type<tc>, window_params = [{transform_indices = @transform_0, window_bounds = array<i64: 16, 128>}, {pipeline_mode = #tpu.pipeline_mode<synchronous>, transform_indices = @transform_1, window_bounds = array<i64: 128, 16>}, {pipeline_mode = #tpu.pipeline_mode<synchronous>, transform_indices = @transform_2, window_bounds = array<i64: 128, 128>}, {pipeline_mode = #tpu.pipeline_mode<synchronous>, transform_indices = @transform_3, window_bounds = array<i64: 128, 1>}, {pipeline_mode = #tpu.pipeline_mode<synchronous>, transform_indices = @transform_4, window_bounds = array<i64: 8, 128>}, {transform_indices = @transform_5, window_bounds = array<i64: 1, 1>}, {transform_indices = @transform_6, window_bounds = array<i64: 1, 128>}]} {
    %c0 = arith.constant 0 : index
    %c0_0 = arith.constant 0 : index
    %0 = vector.load %arg1[%c0, %c0_0] : memref<16x128xbf16, #tpu.memory_space<vmem>>, vector<16x128xbf16>
    %c0_1 = arith.constant 0 : index
    %c0_2 = arith.constant 0 : index
    %1 = vector.load %arg2[%c0_1, %c0_2] : memref<128x16xbf16, #tpu.memory_space<vmem>>, vector<128x16xbf16>
    %cst = arith.constant dense<0.000000e+00> : vector<128x128xf32>
    %2 = tpu.matmul %1, %0, %cst {dimension_numbers = #tpu.dot_dimension_numbers<[1], [0], [0], [1], [0, 0, 1, 1], [], []>} : vector<128x16xbf16>, vector<16x128xbf16>, vector<128x128xf32> -> vector<128x128xf32>
    %3 = arith.truncf %2 : vector<128x128xf32> to vector<128x128xbf16>
    %cst_3 = arith.constant 0.000000e+00 : bf16
    %4 = vector.broadcast %cst_3 : bf16 to vector<128x128xbf16>
    %5 = arith.cmpf ogt, %3, %4 : vector<128x128xbf16>
    %cst_4 = arith.constant 2.001950e-01 : bf16
    %6 = vector.broadcast %cst_4 : bf16 to vector<128x128xbf16>
    %7 = arith.mulf %3, %6 : vector<128x128xbf16>
    %8 = arith.select %5, %3, %7 : vector<128x128xi1>, vector<128x128xbf16>
    %c0_5 = arith.constant 0 : index
    %c0_6 = arith.constant 0 : index
    %9 = vector.load %arg3[%c0_5, %c0_6] : memref<128x128xbf16, #tpu.memory_space<vmem>>, vector<128x128xbf16>
    %cst_7 = arith.constant dense<0.000000e+00> : vector<128x128xf32>
    %10 = tpu.matmul %9, %8, %cst_7 {dimension_numbers = #tpu.dot_dimension_numbers<[1], [0], [0], [1], [0, 0, 1, 1], [], []>} : vector<128x128xbf16>, vector<128x128xbf16>, vector<128x128xf32> -> vector<128x128xf32>
    %11 = arith.truncf %10 : vector<128x128xf32> to vector<128x128xbf16>
    %c0_8 = arith.constant 0 : index
    %c0_9 = arith.constant 0 : index
    %12 = vector.load %arg4[%c0_8, %c0_9] : memref<128x1xbf16, #tpu.memory_space<vmem>>, vector<128x1xbf16>
    %13 = vector.broadcast %12 : vector<128x1xbf16> to vector<128x128xbf16>
    %14 = arith.addf %11, %13 : vector<128x128xbf16>
    %cst_10 = arith.constant 0.000000e+00 : bf16
    %15 = vector.broadcast %cst_10 : bf16 to vector<128x128xbf16>
    %16 = arith.cmpf ogt, %14, %15 : vector<128x128xbf16>
    %cst_11 = arith.constant 2.001950e-01 : bf16
    %17 = vector.broadcast %cst_11 : bf16 to vector<128x128xbf16>
    %18 = arith.mulf %14, %17 : vector<128x128xbf16>
    %19 = arith.select %16, %14, %18 : vector<128x128xi1>, vector<128x128xbf16>
    %c0_12 = arith.constant 0 : index
    %c0_13 = arith.constant 0 : index
    %20 = vector.load %arg5[%c0_12, %c0_13] : memref<8x128xbf16, #tpu.memory_space<vmem>>, vector<8x128xbf16>
    %cst_14 = arith.constant dense<0.000000e+00> : vector<8x128xf32>
    %21 = tpu.matmul %20, %19, %cst_14 {dimension_numbers = #tpu.dot_dimension_numbers<[1], [0], [0], [1], [0, 0, 1, 1], [], []>} : vector<8x128xbf16>, vector<128x128xbf16>, vector<8x128xf32> -> vector<8x128xf32>
    %22 = vector.extract_strided_slice %21 {offsets = [0, 0], sizes = [1, 128], strides = [1, 1]} : vector<8x128xf32> to vector<1x128xf32>
    %c0_15 = arith.constant 0 : index
    %c0_16 = arith.constant 0 : index
    %23 = memref.load %arg6[%c0_15, %c0_16] : memref<1x1xf32, #tpu.memory_space<smem>>
    %24 = vector.broadcast %23 : f32 to vector<1x128xf32>
    %25 = arith.addf %22, %24 : vector<1x128xf32>
    %26 = arith.negf %25 : vector<1x128xf32>
    %27 = math.exp %26 : vector<1x128xf32>
    %cst_17 = arith.constant 1.000000e+00 : f32
    %28 = vector.broadcast %cst_17 : f32 to vector<1x128xf32>
    %29 = arith.addf %28, %27 : vector<1x128xf32>
    %30 = arith.divf %28, %29 : vector<1x128xf32>
    %c0_18 = arith.constant 0 : index
    %c0_19 = arith.constant 0 : index
    %31 = vector.load %arg7[%c0_18, %c0_19] : memref<1x128xf32, #tpu.memory_space<vmem>>, vector<1x128xf32>
    tpu.vector_store %arg7[%c0_18, %c0_19], %30 {strides = array<i32>} : memref<1x128xf32, #tpu.memory_space<vmem>>, vector<1x128xf32>,
    return
  }
  func.func @transform_0(%arg0: i32) -> (i32, i32) {
    %c0_i32 = arith.constant 0 : i32
    %c0_i32_0 = arith.constant 0 : i32
    return %c0_i32, %arg0 : i32, i32
  }
  func.func @transform_1(%arg0: i32) -> (i32, i32) {
    %c0_i32 = arith.constant 0 : i32
    %c0_i32_0 = arith.constant 0 : i32
    %c0_i32_1 = arith.constant 0 : i32
    return %c0_i32, %c0_i32_0 : i32, i32
  }
  func.func @transform_2(%arg0: i32) -> (i32, i32) {
    %c0_i32 = arith.constant 0 : i32
    %c0_i32_0 = arith.constant 0 : i32
    %c0_i32_1 = arith.constant 0 : i32
    return %c0_i32, %c0_i32_0 : i32, i32
  }
  func.func @transform_3(%arg0: i32) -> (i32, i32) {
    %c0_i32 = arith.constant 0 : i32
    %c0_i32_0 = arith.constant 0 : i32
    %c0_i32_1 = arith.constant 0 : i32
    return %c0_i32, %c0_i32_0 : i32, i32
  }
  func.func @transform_4(%arg0: i32) -> (i32, i32) {
    %c0_i32 = arith.constant 0 : i32
    %c0_i32_0 = arith.constant 0 : i32
    %c0_i32_1 = arith.constant 0 : i32
    return %c0_i32, %c0_i32_0 : i32, i32
  }
  func.func @transform_5(%arg0: i32) -> (i32, i32) {
    %c0_i32 = arith.constant 0 : i32
    %c0_i32_0 = arith.constant 0 : i32
    %c0_i32_1 = arith.constant 0 : i32
    return %c0_i32, %c0_i32_0 : i32, i32
  }
  func.func @transform_6(%arg0: i32) -> (i32, i32) {
    %c0_i32 = arith.constant 0 : i32
    %c0_i32_0 = arith.constant 0 : i32
    return %c0_i32, %arg0 : i32, i32
  }
}

</mosaic_0001>

<llo_original>
// kernel: tpu_custom_call.1
$region0: #{tpu_custom_call.1}
  #allocation0 [shape = 'u32[]', space=smem, size = 0x4, offset = 0x4, fixed_abs, tag = 'smem constant byte address 0x4 - core index']
  #allocation1 [shape = 'u32[144,128]{1,0:T(1,128)}', space=vmem, size = 0x12000, scoped, tag = 'internal scratch']
  #allocation2 [shape = 'f32[1,1]{1,0:T(1,128)S(6)}', space=smem, size = 0x200, scoped, tag = 'scoped memory for tpu_custom_call.1']
  %s0 = inlined_call_operand.vmem [shape: bf16[16,128], index: 0, kind: input, shape index: {}]
  %s1 = inlined_call_operand.vmem [shape: bf16[128,16], index: 1, kind: input, shape index: {}]
  %s2 = inlined_call_operand.vmem [shape: bf16[128,128], index: 2, kind: input, shape index: {}]
  %s3 = inlined_call_operand.vmem [shape: bf16[128,1], index: 3, kind: input, shape index: {}]
  %s4 = inlined_call_operand.vmem [shape: bf16[8,128], index: 4, kind: input, shape index: {}]
  %s5 = inlined_call_operand.<no memory space> [shape: f32[1,1], index: 5, kind: input, shape index: {}]
  %s6 = inlined_call_operand.hbm [shape: f32[1,128], index: 6, kind: output, shape index: {}]
  %s7 = sld [smem:[#allocation0]]
  $region34: #{tpu_custom_call.1} parent=0
    _
  %s9 = ssub.s32 1, %s7
  %s10 = scalar_select 0, %s9, %s7
  %11 = sst [smem:[#allocation2]] %s5
  $region1: #{tpu_custom_call.1} parent=0
    #allocation3 [shape = 'u8[512]{0}', space=vmem, size = 0x400, scoped, tag = 'output window, operand 0, single buffered']
    #allocation4 [shape = 's32[1]{0}', space=sflag, size = 0x4, scoped, tag = 'scoped memory for tpu_custom_call.1']
    %12 = vsyncpa [#allocation4], 0
    // Predicated region
    $region2: #{tpu_custom_call.1} parent=1 // pred_check
      _
    $region3: #{tpu_custom_call.1} parent=1 // pred_check_branch
      %14 = sbr.rel (0) target = $region5
    $region4: #{tpu_custom_call.1} parent=1 // pred_region
      _
    $region5: #{tpu_custom_call.1} parent=1 // pred_fallthru
      _
    // Predicated region
    $region6: #{tpu_custom_call.1} parent=1 // pred_check
      _
    $region7: #{tpu_custom_call.1} parent=1 // pred_check_branch
      %16 = sbr.rel (0) target = $region9
    $region8: #{tpu_custom_call.1} parent=1 // pred_region
      _
    $region9: #{tpu_custom_call.1} parent=1 // pred_fallthru
      _
    // Predicated region
    $region10: #{tpu_custom_call.1} parent=1 // pred_check
      _
    $region11: #{tpu_custom_call.1} parent=1 // pred_check_branch
      %18 = sbr.rel (0) target = $region13
    $region12: #{tpu_custom_call.1} parent=1 // pred_region
      _
    $region13: #{tpu_custom_call.1} parent=1 // pred_fallthru
      _
    // Predicated region
    $region14: #{tpu_custom_call.1} parent=1 // pred_check
      _
    $region15: #{tpu_custom_call.1} parent=1 // pred_check_branch
      %20 = sbr.rel (0) target = $region17
    $region16: #{tpu_custom_call.1} parent=1 // pred_region
      _
    $region17: #{tpu_custom_call.1} parent=1 // pred_fallthru
      _
    // Predicated region
    $region18: #{tpu_custom_call.1} parent=1 // pred_check
      _
    $region19: #{tpu_custom_call.1} parent=1 // pred_check_branch
      %22 = sbr.rel (0) target = $region21
    $region20: #{tpu_custom_call.1} parent=1 // pred_region
      _
    $region21: #{tpu_custom_call.1} parent=1 // pred_fallthru
      _
    // Predicated region
    $region22: #{tpu_custom_call.1} parent=1 // pred_check
      _
    $region23: #{tpu_custom_call.1} parent=1 // pred_check_branch
      %24 = sbr.rel (0) target = $region25
    $region24: #{tpu_custom_call.1} parent=1 // pred_region
      _
    $region25: #{tpu_custom_call.1} parent=1 // pred_fallthru
      _
    %v27 = vld [vmem:[%s0] sm:$0xf]
    %v28 = vld [vmem:[%s0 + $0x4] sm:$0xf]
    %v29 = vld [vmem:[%s1] sm:$0xf]
    %v30 = vld [vmem:[%s1 + $0x4] sm:$0xf]
    %v31 = vld [vmem:[%s1 + $0x8] sm:$0xf]
    %v32 = vld [vmem:[%s1 + $0xc] sm:$0xf]
    %v33 = vld [vmem:[%s1 + $0x10] sm:$0xf]
    %v34 = vld [vmem:[%s1 + $0x14] sm:$0xf]
    %v35 = vld [vmem:[%s1 + $0x18] sm:$0xf]
    %v36 = vld [vmem:[%s1 + $0x1c] sm:$0xf]
    %v37 = vld [vmem:[%s1 + $0x20] sm:$0xf]
    %v38 = vld [vmem:[%s1 + $0x24] sm:$0xf]
    %v39 = vld [vmem:[%s1 + $0x28] sm:$0xf]
    %v40 = vld [vmem:[%s1 + $0x2c] sm:$0xf]
    %v41 = vld [vmem:[%s1 + $0x30] sm:$0xf]
    %v42 = vld [vmem:[%s1 + $0x34] sm:$0xf]
    %v43 = vld [vmem:[%s1 + $0x38] sm:$0xf]
    %v44 = vld [vmem:[%s1 + $0x3c] sm:$0xf]
    %v61 = vunpack.c.l.b16 %v29
    %v62 = vunpack.c.l.b16 %v30
    %v63 = vunpack.c.l.b16 %v31
    %v64 = vunpack.c.l.b16 %v32
    %v65 = vunpack.c.l.b16 %v33
    %v66 = vunpack.c.l.b16 %v34
    %v67 = vunpack.c.l.b16 %v35
    %v68 = vunpack.c.l.b16 %v36
    %v69 = vunpack.c.l.b16 %v37
    %v70 = vunpack.c.l.b16 %v38
    %v71 = vunpack.c.l.b16 %v39
    %v72 = vunpack.c.l.b16 %v40
    %v73 = vunpack.c.l.b16 %v41
    %v74 = vunpack.c.l.b16 %v42
    %v75 = vunpack.c.l.b16 %v43
    %v76 = vunpack.c.l.b16 %v44
    %v77 = vpack.c.b16 %v62, %v61
    %v78 = vpack.c.b16 %v64, %v63
    %v79 = vpack.c.b16 %v66, %v65
    %v80 = vpack.c.b16 %v68, %v67
    %v81 = vpack.c.b16 %v70, %v69
    %v82 = vpack.c.b16 %v72, %v71
    %v83 = vpack.c.b16 %v74, %v73
    %v84 = vpack.c.b16 %v76, %v75
    %v87 = vunpack.c.l.b16 %v27
    %v88 = vunpack.c.l.b16 %v28
    %v89 = vpack.c.b16 %v88, %v87
    %vm91 = vcmask 130048
    %v93 = vsel %vm91, %v77, 0
    %v96 = vsel %vm91, %v78, 0
    %v99 = vsel %vm91, %v79, 0
    %v102 = vsel %vm91, %v80, 0
    %v105 = vsel %vm91, %v81, 0
    %v108 = vsel %vm91, %v82, 0
    %v111 = vsel %vm91, %v83, 0
    %v114 = vsel %vm91, %v84, 0
    %116 = vmatprep.subr.bf16.mxu0 0
    %117 = vmatpush1.bf16.msra.mxu0 0
    %118 = vmatprep.subr.bf16.mxu0 0
    %119 = vmatpush1.bf16.msra.mxu0 0
    %120 = vmatprep.subr.bf16.mxu0 0
    %121 = vmatpush1.bf16.msra.mxu0 0
    %122 = vmatprep.subr.bf16.mxu0 0
    %123 = vmatpush1.bf16.msra.mxu0 0
    %124 = vmatprep.subr.bf16.mxu0 0
    %125 = vmatpush1.bf16.msra.mxu0 0
    %126 = vmatprep.subr.bf16.mxu0 0
    %127 = vmatpush1.bf16.msra.mxu0 0
    %128 = vmatprep.subr.bf16.mxu0 0
    %129 = vmatpush1.bf16.msra.mxu0 0
    %130 = vmatprep.subr.bf16.mxu0 0
    %131 = vmatpush1.bf16.msra.mxu0 %v89
    %132 = vmatprep.subr.bf16.mxu0 0
    %133 = vmatpush2.bf16.msra.mxu0 0
    %134 = vmatprep.subr.bf16.mxu0 0
    %135 = vmatpush2.bf16.msra.mxu0 0
    %136 = vmatprep.subr.bf16.mxu0 0
    %137 = vmatpush2.bf16.msra.mxu0 0
    %138 = vmatprep.subr.bf16.mxu0 0
    %139 = vmatpush2.bf16.msra.mxu0 0
    %140 = vmatprep.subr.bf16.mxu0 0
    %141 = vmatpush2.bf16.msra.mxu0 0
    %142 = vmatprep.subr.bf16.mxu0 0
    %143 = vmatpush2.bf16.msra.mxu0 0
    %144 = vmatprep.subr.bf16.mxu0 0
    %145 = vmatpush2.bf16.msra.mxu0 0
    %146 = vmatprep.subr.bf16.mxu0 0
    %147 = vmatpush2.bf16.msra.mxu0 0
    %148 = vmatprep.mubr.bf16.mxu0 0
    %149 = vmatmul.mubr.bf16.gmra.mxu0 %v93
    %v150 = vpop.f32.mrf.mxu0
    %v151 = vadd.f32 0.0, %v150
    %v152 = vpop.f32.mrf.mxu0
    %v153 = vpop.f32.mrf.mxu0
    %v154 = vadd.f32 0.0, %v153
    %v155 = vpop.f32.mrf.mxu0
    %156 = vmatprep.mubr.bf16.mxu0 0
    %157 = vmatmul.mubr.bf16.gmra.mxu0 %v96
    %v158 = vpop.f32.mrf.mxu0
    %v159 = vadd.f32 0.0, %v158
    %v160 = vpop.f32.mrf.mxu0
    %v161 = vpop.f32.mrf.mxu0
    %v162 = vadd.f32 0.0, %v161
    %v163 = vpop.f32.mrf.mxu0
    %164 = vmatprep.mubr.bf16.mxu0 0
    %165 = vmatmul.mubr.bf16.gmra.mxu0 %v99
    %v166 = vpop.f32.mrf.mxu0
    %v167 = vadd.f32 0.0, %v166
    %v168 = vpop.f32.mrf.mxu0
    %v169 = vpop.f32.mrf.mxu0
    %v170 = vadd.f32 0.0, %v169
    %v171 = vpop.f32.mrf.mxu0
    %172 = vmatprep.mubr.bf16.mxu0 0
    %173 = vmatmul.mubr.bf16.gmra.mxu0 %v102
    %v174 = vpop.f32.mrf.mxu0
    %v175 = vadd.f32 0.0, %v174
    %v176 = vpop.f32.mrf.mxu0
    %v177 = vpop.f32.mrf.mxu0
    %v178 = vadd.f32 0.0, %v177
    %v179 = vpop.f32.mrf.mxu0
    %180 = vmatprep.mubr.bf16.mxu0 0
    %181 = vmatmul.mubr.bf16.gmra.mxu0 %v105
    %v182 = vpop.f32.mrf.mxu0
    %v183 = vadd.f32 0.0, %v182
    %v184 = vpop.f32.mrf.mxu0
    %v185 = vpop.f32.mrf.mxu0
    %v186 = vadd.f32 0.0, %v185
    %v187 = vpop.f32.mrf.mxu0
    %188 = vmatprep.mubr.bf16.mxu0 0
    %189 = vmatmul.mubr.bf16.gmra.mxu0 %v108
    %v190 = vpop.f32.mrf.mxu0
    %v191 = vadd.f32 0.0, %v190
    %v192 = vpop.f32.mrf.mxu0
    %v193 = vpop.f32.mrf.mxu0
    %v194 = vadd.f32 0.0, %v193
    %v195 = vpop.f32.mrf.mxu0
    %196 = vmatprep.mubr.bf16.mxu0 0
    %197 = vmatmul.mubr.bf16.gmra.mxu0 %v111
    %v198 = vpop.f32.mrf.mxu0
    %v199 = vadd.f32 0.0, %v198
    %v200 = vpop.f32.mrf.mxu0
    %v201 = vpop.f32.mrf.mxu0
    %v202 = vadd.f32 0.0, %v201
    %v203 = vpop.f32.mrf.mxu0
    %204 = vmatprep.mubr.bf16.mxu0 0
    %205 = vmatmul.mubr.bf16.gmra.mxu0 %v114
    %v206 = vpop.f32.mrf.mxu0
    %v207 = vadd.f32 0.0, %v206
    %v208 = vpop.f32.mrf.mxu0
    %v209 = vpop.f32.mrf.mxu0
    %v210 = vadd.f32 0.0, %v209
    %v211 = vpop.f32.mrf.mxu0
    %212 = vdwg.mxu0
    %v213 = vpack.c.bf16 %v154, %v151
    %v214 = vpack.c.bf16 %v162, %v159
    %v215 = vpack.c.bf16 %v170, %v167
    %v216 = vpack.c.bf16 %v178, %v175
    %v217 = vpack.c.bf16 %v186, %v183
    %v218 = vpack.c.bf16 %v194, %v191
    %v219 = vpack.c.bf16 %v202, %v199
    %v220 = vpack.c.bf16 %v210, %v207
    %vm221 = vcmp.gt.bf16.partialorder %v213, 0
    %vm222 = vcmp.gt.bf16.partialorder %v214, 0
    %vm223 = vcmp.gt.bf16.partialorder %v215, 0
    %vm224 = vcmp.gt.bf16.partialorder %v216, 0
    %vm225 = vcmp.gt.bf16.partialorder %v217, 0
    %vm226 = vcmp.gt.bf16.partialorder %v218, 0
    %vm227 = vcmp.gt.bf16.partialorder %v219, 0
    %vm228 = vcmp.gt.bf16.partialorder %v220, 0
    %v229 = vmul.bf16 %v213, 1045249613
    %v230 = vmul.bf16 %v214, 1045249613
    %v231 = vmul.bf16 %v215, 1045249613
    %v232 = vmul.bf16 %v216, 1045249613
    %v233 = vmul.bf16 %v217, 1045249613
    %v234 = vmul.bf16 %v218, 1045249613
    %v235 = vmul.bf16 %v219, 1045249613
    %v236 = vmul.bf16 %v220, 1045249613
    %v237 = vsel %vm221, %v213, %v229
    %v238 = vsel %vm222, %v214, %v230
    %v239 = vsel %vm223, %v215, %v231
    %v240 = vsel %vm224, %v216, %v232
    %v241 = vsel %vm225, %v217, %v233
    %v242 = vsel %vm226, %v218, %v234
    %v243 = vsel %vm227, %v219, %v235
    %v244 = vsel %vm228, %v220, %v236
    %v245 = vld [vmem:[%s2] sm:$0xf]
    %v246 = vld [vmem:[%s2 + $0x4] sm:$0xf]
    %v247 = vld [vmem:[%s2 + $0x8] sm:$0xf]
    %v248 = vld [vmem:[%s2 + $0xc] sm:$0xf]
    %v249 = vld [vmem:[%s2 + $0x10] sm:$0xf]
    %v250 = vld [vmem:[%s2 + $0x14] sm:$0xf]
    %v251 = vld [vmem:[%s2 + $0x18] sm:$0xf]
    %v252 = vld [vmem:[%s2 + $0x1c] sm:$0xf]
    %v253 = vld [vmem:[%s2 + $0x20] sm:$0xf]
    %v254 = vld [vmem:[%s2 + $0x24] sm:$0xf]
    %v255 = vld [vmem:[%s2 + $0x28] sm:$0xf]
    %v256 = vld [vmem:[%s2 + $0x2c] sm:$0xf]
    %v257 = vld [vmem:[%s2 + $0x30] sm:$0xf]
    %v258 = vld [vmem:[%s2 + $0x34] sm:$0xf]
    %v259 = vld [vmem:[%s2 + $0x38] sm:$0xf]
    %v260 = vld [vmem:[%s2 + $0x3c] sm:$0xf]
    %v277 = vunpack.c.l.b16 %v245
    %v278 = vunpack.c.l.b16 %v246
    %v279 = vunpack.c.l.b16 %v247
    %v280 = vunpack.c.l.b16 %v248
    %v281 = vunpack.c.l.b16 %v249
    %v282 = vunpack.c.l.b16 %v250
    %v283 = vunpack.c.l.b16 %v251
    %v284 = vunpack.c.l.b16 %v252
    %v285 = vunpack.c.l.b16 %v253
    %v286 = vunpack.c.l.b16 %v254
    %v287 = vunpack.c.l.b16 %v255
    %v288 = vunpack.c.l.b16 %v256
    %v289 = vunpack.c.l.b16 %v257
    %v290 = vunpack.c.l.b16 %v258
    %v291 = vunpack.c.l.b16 %v259
    %v292 = vunpack.c.l.b16 %v260
    %v293 = vpack.c.b16 %v278, %v277
    %v294 = vpack.c.b16 %v280, %v279
    %v295 = vpack.c.b16 %v282, %v281
    %v296 = vpack.c.b16 %v284, %v283
    %v297 = vpack.c.b16 %v286, %v285
    %v298 = vpack.c.b16 %v288, %v287
    %v299 = vpack.c.b16 %v290, %v289
    %v300 = vpack.c.b16 %v292, %v291
    %309 = vmatprep.subr.bf16.mxu0 0
    %310 = vmatpush1.bf16.msra.mxu0 %v244
    %311 = vmatprep.subr.bf16.mxu0 0
    %312 = vmatpush1.bf16.msra.mxu0 %v243
    %313 = vmatprep.subr.bf16.mxu0 0
    %314 = vmatpush1.bf16.msra.mxu0 %v242
    %315 = vmatprep.subr.bf16.mxu0 0
    %316 = vmatpush1.bf16.msra.mxu0 %v241
    %317 = vmatprep.subr.bf16.mxu0 0
    %318 = vmatpush1.bf16.msra.mxu0 %v240
    %319 = vmatprep.subr.bf16.mxu0 0
    %320 = vmatpush1.bf16.msra.mxu0 %v239
    %321 = vmatprep.subr.bf16.mxu0 0
    %322 = vmatpush1.bf16.msra.mxu0 %v238
    %323 = vmatprep.subr.bf16.mxu0 0
    %324 = vmatpush1.bf16.msra.mxu0 %v237
    %325 = vmatprep.subr.bf16.mxu0 0
    %326 = vmatpush2.bf16.msra.mxu0 0
    %327 = vmatprep.subr.bf16.mxu0 0
    %328 = vmatpush2.bf16.msra.mxu0 0
    %329 = vmatprep.subr.bf16.mxu0 0
    %330 = vmatpush2.bf16.msra.mxu0 0
    %331 = vmatprep.subr.bf16.mxu0 0
    %332 = vmatpush2.bf16.msra.mxu0 0
    %333 = vmatprep.subr.bf16.mxu0 0
    %334 = vmatpush2.bf16.msra.mxu0 0
    %335 = vmatprep.subr.bf16.mxu0 0
    %336 = vmatpush2.bf16.msra.mxu0 0
    %337 = vmatprep.subr.bf16.mxu0 0
    %338 = vmatpush2.bf16.msra.mxu0 0
    %339 = vmatprep.subr.bf16.mxu0 0
    %340 = vmatpush2.bf16.msra.mxu0 0
    %341 = vmatprep.mubr.bf16.mxu0 0
    %342 = vmatmul.mubr.bf16.gmra.mxu0 %v293
    %v343 = vpop.f32.mrf.mxu0
    %v344 = vadd.f32 0.0, %v343
    %v345 = vpop.f32.mrf.mxu0
    %v346 = vpop.f32.mrf.mxu0
    %v347 = vadd.f32 0.0, %v346
    %v348 = vpop.f32.mrf.mxu0
    %349 = vmatprep.mubr.bf16.mxu0 0
    %350 = vmatmul.mubr.bf16.gmra.mxu0 %v294
    %v351 = vpop.f32.mrf.mxu0
    %v352 = vadd.f32 0.0, %v351
    %v353 = vpop.f32.mrf.mxu0
    %v354 = vpop.f32.mrf.mxu0
    %v355 = vadd.f32 0.0, %v354
    %v356 = vpop.f32.mrf.mxu0
    %357 = vmatprep.mubr.bf16.mxu0 0
    %358 = vmatmul.mubr.bf16.gmra.mxu0 %v295
    %v359 = vpop.f32.mrf.mxu0
    %v360 = vadd.f32 0.0, %v359
    %v361 = vpop.f32.mrf.mxu0
    %v362 = vpop.f32.mrf.mxu0
    %v363 = vadd.f32 0.0, %v362
    %v364 = vpop.f32.mrf.mxu0
    %365 = vmatprep.mubr.bf16.mxu0 0
    %366 = vmatmul.mubr.bf16.gmra.mxu0 %v296
    %v367 = vpop.f32.mrf.mxu0
    %v368 = vadd.f32 0.0, %v367
    %v369 = vpop.f32.mrf.mxu0
    %v370 = vpop.f32.mrf.mxu0
    %v371 = vadd.f32 0.0, %v370
    %v372 = vpop.f32.mrf.mxu0
    %373 = vmatprep.mubr.bf16.mxu0 0
    %374 = vmatmul.mubr.bf16.gmra.mxu0 %v297
    %v375 = vpop.f32.mrf.mxu0
    %v376 = vadd.f32 0.0, %v375
    %v377 = vpop.f32.mrf.mxu0
    %v378 = vpop.f32.mrf.mxu0
    %v379 = vadd.f32 0.0, %v378
    %v380 = vpop.f32.mrf.mxu0
    %381 = vmatprep.mubr.bf16.mxu0 0
    %382 = vmatmul.mubr.bf16.gmra.mxu0 %v298
    %v383 = vpop.f32.mrf.mxu0
    %v384 = vadd.f32 0.0, %v383
    %v385 = vpop.f32.mrf.mxu0
    %v386 = vpop.f32.mrf.mxu0
    %v387 = vadd.f32 0.0, %v386
    %v388 = vpop.f32.mrf.mxu0
    %389 = vmatprep.mubr.bf16.mxu0 0
    %390 = vmatmul.mubr.bf16.gmra.mxu0 %v299
    %v391 = vpop.f32.mrf.mxu0
    %v392 = vadd.f32 0.0, %v391
    %v393 = vpop.f32.mrf.mxu0
    %v394 = vpop.f32.mrf.mxu0
    %v395 = vadd.f32 0.0, %v394
    %v396 = vpop.f32.mrf.mxu0
    %397 = vmatprep.mubr.bf16.mxu0 0
    %398 = vmatmul.mubr.bf16.gmra.mxu0 %v300
    %v399 = vpop.f32.mrf.mxu0
    %v400 = vadd.f32 0.0, %v399
    %v401 = vpop.f32.mrf.mxu0
    %v402 = vpop.f32.mrf.mxu0
    %v403 = vadd.f32 0.0, %v402
    %v404 = vpop.f32.mrf.mxu0
    %405 = vdwg.mxu0
    %v406 = vpack.c.bf16 %v347, %v344
    %v407 = vpack.c.bf16 %v355, %v352
    %v408 = vpack.c.bf16 %v363, %v360
    %v409 = vpack.c.bf16 %v371, %v368
    %v410 = vpack.c.bf16 %v379, %v376
    %v411 = vpack.c.bf16 %v387, %v384
    %v412 = vpack.c.bf16 %v395, %v392
    %v413 = vpack.c.bf16 %v403, %v400
    %v414 = vld [vmem:[%s3] sm:$0xf]
    %v415 = vld [vmem:[%s3 + $0x4] sm:$0xf]
    %v416 = vld [vmem:[%s3 + $0x8] sm:$0xf]
    %v417 = vld [vmem:[%s3 + $0xc] sm:$0xf]
    %v418 = vld [vmem:[%s3 + $0x10] sm:$0xf]
    %v419 = vld [vmem:[%s3 + $0x14] sm:$0xf]
    %v420 = vld [vmem:[%s3 + $0x18] sm:$0xf]
    %v421 = vld [vmem:[%s3 + $0x1c] sm:$0xf]
    %v422 = vld [vmem:[%s3 + $0x20] sm:$0xf]
    %v423 = vld [vmem:[%s3 + $0x24] sm:$0xf]
    %v424 = vld [vmem:[%s3 + $0x28] sm:$0xf]
    %v425 = vld [vmem:[%s3 + $0x2c] sm:$0xf]
    %v426 = vld [vmem:[%s3 + $0x30] sm:$0xf]
    %v427 = vld [vmem:[%s3 + $0x34] sm:$0xf]
    %v428 = vld [vmem:[%s3 + $0x38] sm:$0xf]
    %v429 = vld [vmem:[%s3 + $0x3c] sm:$0xf]
    %431 = vset.pattern.permute.xlu0 0
    %432 = vperm.xlu0 %431, %v414
    %v433 = vpop.permute.xlu0 %432
    %v436 = vunpack.c.l.s4 839922192
    %v437 = vunpack.c.0.s8 %v436
    %v438 = vlaneseq
    %v439 = vshrl.u32 %v438, 7
    %v440 = vsub.s32 %v437, %v439
    %v441 = vrot.slane %v433, %v440
    %443 = vset.pattern.permute.xlu0 0
    %444 = vperm.xlu0 %443, %v415
    %v445 = vpop.permute.xlu0 %444
    %v448 = vunpack.c.l.s4 839922192
    %v449 = vunpack.c.0.s8 %v448
    %v450 = vlaneseq
    %v451 = vshrl.u32 %v450, 7
    %v452 = vsub.s32 %v449, %v451
    %v453 = vrot.slane %v445, %v452
    %455 = vset.pattern.permute.xlu0 0
    %456 = vperm.xlu0 %455, %v416
    %v457 = vpop.permute.xlu0 %456
    %v460 = vunpack.c.l.s4 839922192
    %v461 = vunpack.c.0.s8 %v460
    %v462 = vlaneseq
    %v463 = vshrl.u32 %v462, 7
    %v464 = vsub.s32 %v461, %v463
    %v465 = vrot.slane %v457, %v464
    %467 = vset.pattern.permute.xlu0 0
    %468 = vperm.xlu0 %467, %v417
    %v469 = vpop.permute.xlu0 %468
    %v472 = vunpack.c.l.s4 839922192
    %v473 = vunpack.c.0.s8 %v472
    %v474 = vlaneseq
    %v475 = vshrl.u32 %v474, 7
    %v476 = vsub.s32 %v473, %v475
    %v477 = vrot.slane %v469, %v476
    %479 = vset.pattern.permute.xlu0 0
    %480 = vperm.xlu0 %479, %v418
    %v481 = vpop.permute.xlu0 %480
    %v484 = vunpack.c.l.s4 839922192
    %v485 = vunpack.c.0.s8 %v484
    %v486 = vlaneseq
    %v487 = vshrl.u32 %v486, 7
    %v488 = vsub.s32 %v485, %v487
    %v489 = vrot.slane %v481, %v488
    %491 = vset.pattern.permute.xlu0 0
    %492 = vperm.xlu0 %491, %v419
    %v493 = vpop.permute.xlu0 %492
    %v496 = vunpack.c.l.s4 839922192
    %v497 = vunpack.c.0.s8 %v496
    %v498 = vlaneseq
    %v499 = vshrl.u32 %v498, 7
    %v500 = vsub.s32 %v497, %v499
    %v501 = vrot.slane %v493, %v500
    %503 = vset.pattern.permute.xlu0 0
    %504 = vperm.xlu0 %503, %v420
    %v505 = vpop.permute.xlu0 %504
    %v508 = vunpack.c.l.s4 839922192
    %v509 = vunpack.c.0.s8 %v508
    %v510 = vlaneseq
    %v511 = vshrl.u32 %v510, 7
    %v512 = vsub.s32 %v509, %v511
    %v513 = vrot.slane %v505, %v512
    %515 = vset.pattern.permute.xlu0 0
    %516 = vperm.xlu0 %515, %v421
    %v517 = vpop.permute.xlu0 %516
    %v520 = vunpack.c.l.s4 839922192
    %v521 = vunpack.c.0.s8 %v520
    %v522 = vlaneseq
    %v523 = vshrl.u32 %v522, 7
    %v524 = vsub.s32 %v521, %v523
    %v525 = vrot.slane %v517, %v524
    %527 = vset.pattern.permute.xlu0 0
    %528 = vperm.xlu0 %527, %v422
    %v529 = vpop.permute.xlu0 %528
    %v532 = vunpack.c.l.s4 839922192
    %v533 = vunpack.c.0.s8 %v532
    %v534 = vlaneseq
    %v535 = vshrl.u32 %v534, 7
    %v536 = vsub.s32 %v533, %v535
    %v537 = vrot.slane %v529, %v536
    %539 = vset.pattern.permute.xlu0 0
    %540 = vperm.xlu0 %539, %v423
    %v541 = vpop.permute.xlu0 %540
    %v544 = vunpack.c.l.s4 839922192
    %v545 = vunpack.c.0.s8 %v544
    %v546 = vlaneseq
    %v547 = vshrl.u32 %v546, 7
    %v548 = vsub.s32 %v545, %v547
    %v549 = vrot.slane %v541, %v548
    %551 = vset.pattern.permute.xlu0 0
    %552 = vperm.xlu0 %551, %v424
    %v553 = vpop.permute.xlu0 %552
    %v556 = vunpack.c.l.s4 839922192
    %v557 = vunpack.c.0.s8 %v556
    %v558 = vlaneseq
    %v559 = vshrl.u32 %v558, 7
    %v560 = vsub.s32 %v557, %v559
    %v561 = vrot.slane %v553, %v560
    %563 = vset.pattern.permute.xlu0 0
    %564 = vperm.xlu0 %563, %v425
    %v565 = vpop.permute.xlu0 %564
    %v568 = vunpack.c.l.s4 839922192
    %v569 = vunpack.c.0.s8 %v568
    %v570 = vlaneseq
    %v571 = vshrl.u32 %v570, 7
    %v572 = vsub.s32 %v569, %v571
    %v573 = vrot.slane %v565, %v572
    %575 = vset.pattern.permute.xlu0 0
    %576 = vperm.xlu0 %575, %v426
    %v577 = vpop.permute.xlu0 %576
    %v580 = vunpack.c.l.s4 839922192
    %v581 = vunpack.c.0.s8 %v580
    %v582 = vlaneseq
    %v583 = vshrl.u32 %v582, 7
    %v584 = vsub.s32 %v581, %v583
    %v585 = vrot.slane %v577, %v584
    %587 = vset.pattern.permute.xlu0 0
    %588 = vperm.xlu0 %587, %v427
    %v589 = vpop.permute.xlu0 %588
    %v592 = vunpack.c.l.s4 839922192
    %v593 = vunpack.c.0.s8 %v592
    %v594 = vlaneseq
    %v595 = vshrl.u32 %v594, 7
    %v596 = vsub.s32 %v593, %v595
    %v597 = vrot.slane %v589, %v596
    %599 = vset.pattern.permute.xlu0 0
    %600 = vperm.xlu0 %599, %v428
    %v601 = vpop.permute.xlu0 %600
    %v604 = vunpack.c.l.s4 839922192
    %v605 = vunpack.c.0.s8 %v604
    %v606 = vlaneseq
    %v607 = vshrl.u32 %v606, 7
    %v608 = vsub.s32 %v605, %v607
    %v609 = vrot.slane %v601, %v608
    %611 = vset.pattern.permute.xlu0 0
    %612 = vperm.xlu0 %611, %v429
    %v613 = vpop.permute.xlu0 %612
    %v616 = vunpack.c.l.s4 839922192
    %v617 = vunpack.c.0.s8 %v616
    %v618 = vlaneseq
    %v619 = vshrl.u32 %v618, 7
    %v620 = vsub.s32 %v617, %v619
    %v621 = vrot.slane %v613, %v620
    %v638 = vunpack.c.l.b16 %v441
    %v639 = vunpack.c.l.b16 %v453
    %v640 = vunpack.c.l.b16 %v465
    %v641 = vunpack.c.l.b16 %v477
    %v642 = vunpack.c.l.b16 %v489
    %v643 = vunpack.c.l.b16 %v501
    %v644 = vunpack.c.l.b16 %v513
    %v645 = vunpack.c.l.b16 %v525
    %v646 = vunpack.c.l.b16 %v537
    %v647 = vunpack.c.l.b16 %v549
    %v648 = vunpack.c.l.b16 %v561
    %v649 = vunpack.c.l.b16 %v573
    %v650 = vunpack.c.l.b16 %v585
    %v651 = vunpack.c.l.b16 %v597
    %v652 = vunpack.c.l.b16 %v609
    %v653 = vunpack.c.l.b16 %v621
    %v654 = vpack.c.b16 %v639, %v638
    %v655 = vpack.c.b16 %v641, %v640
    %v656 = vpack.c.b16 %v643, %v642
    %v657 = vpack.c.b16 %v645, %v644
    %v658 = vpack.c.b16 %v647, %v646
    %v659 = vpack.c.b16 %v649, %v648
    %v660 = vpack.c.b16 %v651, %v650
    %v661 = vpack.c.b16 %v653, %v652
    %v670 = vadd.bf16 %v406, %v654
    %v671 = vadd.bf16 %v407, %v655
    %v672 = vadd.bf16 %v408, %v656
    %v673 = vadd.bf16 %v409, %v657
    %v674 = vadd.bf16 %v410, %v658
    %v675 = vadd.bf16 %v411, %v659
    %v676 = vadd.bf16 %v412, %v660
    %v677 = vadd.bf16 %v413, %v661
    %vm678 = vcmp.gt.bf16.partialorder %v670, 0
    %vm679 = vcmp.gt.bf16.partialorder %v671, 0
    %vm680 = vcmp.gt.bf16.partialorder %v672, 0
    %vm681 = vcmp.gt.bf16.partialorder %v673, 0
    %vm682 = vcmp.gt.bf16.partialorder %v674, 0
    %vm683 = vcmp.gt.bf16.partialorder %v675, 0
    %vm684 = vcmp.gt.bf16.partialorder %v676, 0
    %vm685 = vcmp.gt.bf16.partialorder %v677, 0
    %v686 = vmul.bf16 %v670, 1045249613
    %v687 = vmul.bf16 %v671, 1045249613
    %v688 = vmul.bf16 %v672, 1045249613
    %v689 = vmul.bf16 %v673, 1045249613
    %v690 = vmul.bf16 %v674, 1045249613
    %v691 = vmul.bf16 %v675, 1045249613
    %v692 = vmul.bf16 %v676, 1045249613
    %v693 = vmul.bf16 %v677, 1045249613
    %v694 = vsel %vm678, %v670, %v686
    %v695 = vsel %vm679, %v671, %v687
    %v696 = vsel %vm680, %v672, %v688
    %v697 = vsel %vm681, %v673, %v689
    %v698 = vsel %vm682, %v674, %v690
    %v699 = vsel %vm683, %v675, %v691
    %v700 = vsel %vm684, %v676, %v692
    %v701 = vsel %vm685, %v677, %v693
    %v702 = vld [vmem:[%s4] sm:$0xf]
    %703 = vmatprep.subr.bf16.mxu0 0
    %704 = vmatpush1.bf16.msra.mxu0 %v701
    %705 = vmatprep.subr.bf16.mxu0 0
    %706 = vmatpush1.bf16.msra.mxu0 %v700
    %707 = vmatprep.subr.bf16.mxu0 0
    %708 = vmatpush1.bf16.msra.mxu0 %v699
    %709 = vmatprep.subr.bf16.mxu0 0
    %710 = vmatpush1.bf16.msra.mxu0 %v698
    %711 = vmatprep.subr.bf16.mxu0 0
    %712 = vmatpush1.bf16.msra.mxu0 %v697
    %713 = vmatprep.subr.bf16.mxu0 0
    %714 = vmatpush1.bf16.msra.mxu0 %v696
    %715 = vmatprep.subr.bf16.mxu0 0
    %716 = vmatpush1.bf16.msra.mxu0 %v695
    %717 = vmatprep.subr.bf16.mxu0 0
    %718 = vmatpush1.bf16.msra.mxu0 %v694
    %719 = vmatprep.subr.bf16.mxu0 0
    %720 = vmatpush2.bf16.msra.mxu0 0
    %721 = vmatprep.subr.bf16.mxu0 0
    %722 = vmatpush2.bf16.msra.mxu0 0
    %723 = vmatprep.subr.bf16.mxu0 0
    %724 = vmatpush2.bf16.msra.mxu0 0
    %725 = vmatprep.subr.bf16.mxu0 0
    %726 = vmatpush2.bf16.msra.mxu0 0
    %727 = vmatprep.subr.bf16.mxu0 0
    %728 = vmatpush2.bf16.msra.mxu0 0
    %729 = vmatprep.subr.bf16.mxu0 0
    %730 = vmatpush2.bf16.msra.mxu0 0
    %731 = vmatprep.subr.bf16.mxu0 0
    %732 = vmatpush2.bf16.msra.mxu0 0
    %733 = vmatprep.subr.bf16.mxu0 0
    %734 = vmatpush2.bf16.msra.mxu0 0
    %735 = vmatprep.mubr.bf16.mxu0 0
    %736 = vmatmul.mubr.bf16.gmra.mxu0 %v702
    %v737 = vpop.f32.mrf.mxu0
    %v738 = vadd.f32 0.0, %v737
    %v739 = vpop.f32.mrf.mxu0
    %v740 = vpop.f32.mrf.mxu0
    %v741 = vpop.f32.mrf.mxu0
    %742 = vdwg.mxu0
    %s743 = sld [smem:[#allocation2]]
    %v744 = vstv %s743
    %v745 = vadd.f32 %v738, %v744
    %v746 = vxor.u32 %v745, 2147483648
    %v747 = vmul.f32 %v746, 1.442695
    %v748 = vpow.pop %v747
    %v749 = vadd.f32 %v748, 1.0
    %v750 = vrcp.pop %v749
    %v751 = vmul.f32 1.0, %v750
    %752 = vst [vmem:[#allocation3] sm:$0x1] %v751
    // Predicated region
    $region26: #{tpu_custom_call.1} parent=1 // pred_check
      _
    $region27: #{tpu_custom_call.1} parent=1 // pred_check_branch
      %754 = sbr.rel (0) target = $region29
    $region28: #{tpu_custom_call.1} parent=1 // pred_region
      %s756 = ssub.s32 16, 16
      %757 = vsyncadd [#allocation4], %s756
      %s759 = sshll.u32 [#allocation3], 4
      %s760 = int_to_ptr.vmem [resolvable:$true] %s759
      %762 = dma.vmem_to_hbm [thread:$0]  %s760, 16, %s6, [#allocation4]
    $region29: #{tpu_custom_call.1} parent=1 // pred_fallthru
      _
    // Predicated region
    $region30: #{tpu_custom_call.1} parent=1 // pred_check
      _
    $region31: #{tpu_custom_call.1} parent=1 // pred_check_branch
      %764 = sbr.rel (0) target = $region33
    $region32: #{tpu_custom_call.1} parent=1 // pred_region
      %765 = dma.done [#allocation4], 16
    $region33: #{tpu_custom_call.1} parent=1 // pred_fallthru
      _
    %766 = vsyncpa [#allocation4], 1

</llo_original>
